<compile_context>
chip_gen: v5e
topology: v5e:2x2
jax: 0.10.0
libtpu: 0.0.40
codegen_flags: <defaults>
</compile_context>

<pallas_src>
import functools

import jax
import jax.numpy as jnp
from jax.experimental import pallas as pl
from jax.experimental.pallas import tpu as pltpu

HIDDEN_DIM_MULTIPLIER = 10
_LANE = 128
_BT_CAP = 16384                # max batch rows per grid step (see header notes)
_SMALL_BATCH_THRESHOLD = 512   # below this, the fused XLA path beats a kernel launch


def _round_up(n, m):
    return ((n + m - 1) // m) * m


@functools.lru_cache(maxsize=None)
def _tensorcores_per_chip():
    """Best-effort TensorCores-per-chip (v4/v5p/v7x: 2, v5e/v6e: 1)."""
    try:
        kind = jax.devices()[0].device_kind.lower()
    except Exception:
        return 1
    return 2 if any(tag in kind for tag in ("v7", "v5p", "v4")) else 1


def _pick_batch_tile(batch, cap=_BT_CAP):
    """Lane-dense (multiple-of-128) batch tile.

    Spreads the padded batch evenly over ceil(B/cap) grid steps so last-tile
    padding waste stays < 128 rows.  Only multi-TensorCore generations force
    >= 2 (and an even number of) grid steps so both cores get balanced work;
    on v5e/v6e a single big tile avoids a gratuitous extra step.
    """
    b_pad = _round_up(batch, _LANE)
    n_tiles = pl.cdiv(b_pad, cap)
    if _tensorcores_per_chip() > 1 and b_pad >= 2 * _LANE:
        n_tiles = max(n_tiles, 2)
        n_tiles += n_tiles % 2            # even grid -> balanced across 2 TCs
    return _round_up(pl.cdiv(b_pad, n_tiles), _LANE)


def _elnn_kernel(xt_ref, w1_ref, b1_ref, w2_ref, b2_ref, w3_ref, b3_ref, o_ref):
    # xt_ref: (C_in, bt)  features x batch (batch on the 128-lane axis)
    # w1_ref: (H, C_in)   b1_ref: (H, 1)
    # w2_ref: (H, H)      b2_ref: (H, 1)
    # w3_ref: (H, 1)      single output channel, as a column
    # b3_ref: (1, 1)      scalar, lives in SMEM
    # o_ref : (1, bt)     lane-dense output block
    xt = xt_ref[...]

    # Layer 1: Linear + ReLU.  Kept on the MXU: with K = C_in = 4 the streaming
    # operand is one sublane-chunk per 128 output columns (cheap vs layer 2).
    h1 = jnp.dot(w1_ref[...], xt, preferred_element_type=jnp.float32)
    h1 = jnp.maximum(h1 + b1_ref[...], 0.0)                        # (H, bt)

    # Layer 2: Linear + ReLU (dominant MXU work).
    h2 = jnp.dot(w2_ref[...], h1, preferred_element_type=jnp.float32)
    h2 = jnp.maximum(h2 + b2_ref[...], 0.0)                        # (H, bt)

    # Layer 3 (out_channels == 1): VPU multiply + sublane (XLU) reduce instead
    # of a degenerate N=1 MXU matmul; bias is an SMEM scalar.
    z = jnp.sum(h2 * w3_ref[...], axis=0, keepdims=True) + b3_ref[0, 0]   # (1, bt)

    # sigmoid(z) = 0.5 * (tanh(z/2) + 1): EUP tanh, no VPU divide, no overflow.
    o_ref[...] = 0.5 * jnp.tanh(0.5 * z) + 0.5


def elnn_reference(x, params):
    """Pure-JAX reference matching the PyTorch forward (also the small-batch path)."""
    w1, b1, w2, b2, w3, b3 = params
    h1 = jnp.maximum(x @ w1.T + b1[:, 0], 0.0)
    h2 = jnp.maximum(h1 @ w2.T + b2[:, 0], 0.0)
    z = h2 @ w3 + b3[0, 0]
    return jax.nn.sigmoid(z)


def elnn_forward(x, params, *, batch_tile=None, force_pallas=False):
    """x: (B, in_edge_channels) float32 -> (B, 1) float32 (sigmoid edge labels)."""
    w1, b1, w2, b2, w3, b3 = params
    B, C_in = x.shape
    H = w1.shape[0]
    # TODO(synk): kernel is specialized to the module default out_edge_channels == 1;
    # C_out > 1 would use a (C_out, H) @ (H, bt) MXU epilogue and a (C_out, bt) out block.
    assert w3.shape == (H, 1) and b3.shape == (1, 1)

    # Small-batch fast path: pallas launch + pad-to-128 + padded-tile compute
    # dominates for tiny B; XLA's fused tiny GEMMs are cheaper there.
    if not force_pallas and B <= _SMALL_BATCH_THRESHOLD:
        return elnn_reference(x, params)

    bt = _pick_batch_tile(B) if batch_tile is None else batch_tile
    assert bt % _LANE == 0, "batch_tile must be a multiple of 128 (lane-dense)"
    B_pad = _round_up(B, bt)          # handles ragged batches by zero-padding
    grid = (B_pad // bt,)

    # Lane-dense layout: batch on the 128-lane axis for both input and output.
    # allow_input_fusion (below) lets XLA fuse this transpose/pad into the
    # pallas_call operand instead of materializing x^T in HBM.
    xt = x.T                                          # (C_in, B)
    if B_pad != B:
        xt = jnp.pad(xt, ((0, 0), (0, B_pad - B)))

    full = lambda i: (0, 0)

    flops = 2 * B_pad * (C_in * H + H * H + H) + 6 * B_pad * H
    bytes_accessed = 4 * (B_pad * C_in + B_pad + C_in * H + H * H + 3 * H + 1)

    out_t = pl.pallas_call(
        _elnn_kernel,
        out_shape=jax.ShapeDtypeStruct((1, B_pad), jnp.float32),
        grid_spec=pltpu.PrefetchScalarGridSpec(
            num_scalar_prefetch=0,
            grid=grid,
            in_specs=[
                pl.BlockSpec((C_in, bt), lambda i: (0, i)),           # x^T tile (lane-dense)
                # Constant index maps below -> VMEM-resident across steps.
                pl.BlockSpec((H, C_in), full),                        # w1 (torch layout)
                pl.BlockSpec((H, 1), full),                           # b1
                pl.BlockSpec((H, H), full),                           # w2
                pl.BlockSpec((H, 1), full),                           # b2
                pl.BlockSpec((H, 1), full),                           # w3 column
                pl.BlockSpec(memory_space=pltpu.MemorySpace.SMEM),    # b3 scalar
            ],
            out_specs=pl.BlockSpec((1, bt), lambda i: (0, i)),        # lane-dense output
        ),
        compiler_params=pltpu.CompilerParams(
            dimension_semantics=("parallel",),
            vmem_limit_bytes=32 * 1024 * 1024,
            allow_input_fusion=[True, False, False, False, False, False, False],
        ),
        cost_estimate=pl.CostEstimate(
            flops=flops, transcendentals=B_pad, bytes_accessed=bytes_accessed),
    )(xt, w1, b1, w2, b2, w3, b3)

    return out_t[0, :B].reshape(B, 1)


def init_elnn_params(key, in_edge_channels, out_edge_channels=1, hidden_dim=None):
    """PyTorch-style U(-1/sqrt(fan_in), 1/sqrt(fan_in)) init.
    Weights in torch's (out_features, in_features) layout; biases as (out, 1)."""
    if hidden_dim is None:
        hidden_dim = in_edge_channels * HIDDEN_DIM_MULTIPLIER
    assert out_edge_channels == 1, "kernel specialized to out_edge_channels == 1"
    ks = jax.random.split(key, 6)

    def lin(kw, kb, fan_in, fan_out):
        bound = 1.0 / (fan_in ** 0.5)
        w = jax.random.uniform(kw, (fan_out, fan_in), jnp.float32, -bound, bound)
        b = jax.random.uniform(kb, (fan_out, 1), jnp.float32, -bound, bound)
        return w, b

    w1, b1 = lin(ks[0], ks[1], in_edge_channels, hidden_dim)
    w2, b2 = lin(ks[2], ks[3], hidden_dim, hidden_dim)
    w3_oc, b3 = lin(ks[4], ks[5], hidden_dim, out_edge_channels)   # (1, H), (1, 1)
    w3 = w3_oc.T                                                   # (H, 1) column
    return (w1, b1, w2, b2, w3, b3)


if __name__ == "__main__":
    key = jax.random.PRNGKey(0)
    k_x, k_p = jax.random.split(key)

    in_edge_channels = 4
    out_edge_channels = 1
    hidden_dim = in_edge_channels * HIDDEN_DIM_MULTIPLIER  # 40
    params = init_elnn_params(k_p, in_edge_channels, out_edge_channels, hidden_dim)

    # Cases: tiny batch forced through the kernel (grid=1, heavy lane padding),
    # tiny batch via the small-batch fast path, ragged batch with an explicit
    # 512-row tile (grid=2 on every generation), and ragged batch with auto tiling.
    cases = [
        (8, dict(force_pallas=True)),
        (8, dict()),
        (1000, dict(force_pallas=True, batch_tile=512)),
        (1000, dict()),
    ]
    for i, (batch, kwargs) in enumerate(cases):
        x = jax.random.normal(jax.random.fold_in(k_x, i),
                              (batch, in_edge_channels), dtype=jnp.float32)
        out = jax.block_until_ready(elnn_forward(x, params, **kwargs))
        ref = jax.block_until_ready(elnn_reference(x, params))
        assert out.shape == (batch, out_edge_channels)
        err = float(jnp.max(jnp.abs(out - ref)))
        assert err < 1e-4, f"batch={batch} kwargs={kwargs}: max abs err {err}"

    print("KERNEL_OK")
</pallas_src>

<mosaic_0001>
module attributes {stable_mosaic.version = 11 : i64} {
  func.func @_elnn_kernel(%arg0: i32, %arg1: memref<4x128xf32, #tpu.memory_space<vmem>>, %arg2: memref<40x4xf32, #tpu.memory_space<vmem>>, %arg3: memref<40x1xf32, #tpu.memory_space<vmem>>, %arg4: memref<40x40xf32, #tpu.memory_space<vmem>>, %arg5: memref<40x1xf32, #tpu.memory_space<vmem>>, %arg6: memref<40x1xf32, #tpu.memory_space<vmem>>, %arg7: memref<1x1xf32, #tpu.memory_space<smem>>, %arg8: memref<1x128xf32, #tpu.memory_space<vmem>>) attributes {dimension_semantics = [#tpu.dimension_semantics<parallel>], iteration_bounds = array<i64: 1>, scalar_prefetch = 0 : i64, scratch_operands = 0 : i64, tpu.core_type = #tpu.core_type<tc>, window_params = [{transform_indices = @transform_0, window_bounds = array<i64: 4, 128>}, {pipeline_mode = #tpu.pipeline_mode<synchronous>, transform_indices = @transform_1, window_bounds = array<i64: 40, 4>}, {pipeline_mode = #tpu.pipeline_mode<synchronous>, transform_indices = @transform_2, window_bounds = array<i64: 40, 1>}, {pipeline_mode = #tpu.pipeline_mode<synchronous>, transform_indices = @transform_3, window_bounds = array<i64: 40, 40>}, {pipeline_mode = #tpu.pipeline_mode<synchronous>, transform_indices = @transform_4, window_bounds = array<i64: 40, 1>}, {pipeline_mode = #tpu.pipeline_mode<synchronous>, transform_indices = @transform_5, window_bounds = array<i64: 40, 1>}, {transform_indices = @transform_6, window_bounds = array<i64: 1, 1>}, {transform_indices = @transform_7, window_bounds = array<i64: 1, 128>}]} {
    %c0 = arith.constant 0 : index
    %c0_0 = arith.constant 0 : index
    %0 = vector.load %arg1[%c0, %c0_0] : memref<4x128xf32, #tpu.memory_space<vmem>>, vector<4x128xf32>
    %c0_1 = arith.constant 0 : index
    %c0_2 = arith.constant 0 : index
    %1 = vector.load %arg2[%c0_1, %c0_2] : memref<40x4xf32, #tpu.memory_space<vmem>>, vector<40x4xf32>
    %cst = arith.constant dense<0.000000e+00> : vector<40x128xf32>
    %2 = tpu.matmul %1, %0, %cst {dimension_numbers = #tpu.dot_dimension_numbers<[1], [0], [0], [1], [0, 0, 1, 1], [], []>} : vector<40x4xf32>, vector<4x128xf32>, vector<40x128xf32> -> vector<40x128xf32>
    %c0_3 = arith.constant 0 : index
    %c0_4 = arith.constant 0 : index
    %3 = vector.load %arg3[%c0_3, %c0_4] : memref<40x1xf32, #tpu.memory_space<vmem>>, vector<40x1xf32>
    %4 = vector.broadcast %3 : vector<40x1xf32> to vector<40x128xf32>
    %5 = arith.addf %2, %4 : vector<40x128xf32>
    %cst_5 = arith.constant 0.000000e+00 : f32
    %6 = vector.broadcast %cst_5 : f32 to vector<40x128xf32>
    %7 = arith.maximumf %5, %6 : vector<40x128xf32>
    %c0_6 = arith.constant 0 : index
    %c0_7 = arith.constant 0 : index
    %8 = vector.load %arg4[%c0_6, %c0_7] : memref<40x40xf32, #tpu.memory_space<vmem>>, vector<40x40xf32>
    %cst_8 = arith.constant dense<0.000000e+00> : vector<40x128xf32>
    %9 = tpu.matmul %8, %7, %cst_8 {dimension_numbers = #tpu.dot_dimension_numbers<[1], [0], [0], [1], [0, 0, 1, 1], [], []>} : vector<40x40xf32>, vector<40x128xf32>, vector<40x128xf32> -> vector<40x128xf32>
    %c0_9 = arith.constant 0 : index
    %c0_10 = arith.constant 0 : index
    %10 = vector.load %arg5[%c0_9, %c0_10] : memref<40x1xf32, #tpu.memory_space<vmem>>, vector<40x1xf32>
    %11 = vector.broadcast %10 : vector<40x1xf32> to vector<40x128xf32>
    %12 = arith.addf %9, %11 : vector<40x128xf32>
    %cst_11 = arith.constant 0.000000e+00 : f32
    %13 = vector.broadcast %cst_11 : f32 to vector<40x128xf32>
    %14 = arith.maximumf %12, %13 : vector<40x128xf32>
    %c0_12 = arith.constant 0 : index
    %c0_13 = arith.constant 0 : index
    %15 = vector.load %arg6[%c0_12, %c0_13] : memref<40x1xf32, #tpu.memory_space<vmem>>, vector<40x1xf32>
    %16 = vector.broadcast %15 : vector<40x1xf32> to vector<40x128xf32>
    %17 = arith.mulf %14, %16 : vector<40x128xf32>
    %cst_14 = arith.constant dense<0.000000e+00> : vector<128xf32>
    %18 = vector.multi_reduction <add>, %17, %cst_14 [0] : vector<40x128xf32> to vector<128xf32>
    %19 = vector.shape_cast %18 : vector<128xf32> to vector<1x128xf32>
    %c0_15 = arith.constant 0 : index
    %c0_16 = arith.constant 0 : index
    %20 = memref.load %arg7[%c0_15, %c0_16] : memref<1x1xf32, #tpu.memory_space<smem>>
    %21 = vector.broadcast %20 : f32 to vector<1x128xf32>
    %22 = arith.addf %19, %21 : vector<1x128xf32>
    %cst_17 = arith.constant 5.000000e-01 : f32
    %23 = vector.broadcast %cst_17 : f32 to vector<1x128xf32>
    %24 = arith.mulf %23, %22 : vector<1x128xf32>
    %25 = math.tanh %24 : vector<1x128xf32>
    %cst_18 = arith.constant 5.000000e-01 : f32
    %26 = vector.broadcast %cst_18 : f32 to vector<1x128xf32>
    %27 = arith.mulf %26, %25 : vector<1x128xf32>
    %cst_19 = arith.constant 5.000000e-01 : f32
    %28 = vector.broadcast %cst_19 : f32 to vector<1x128xf32>
    %29 = arith.addf %27, %28 : vector<1x128xf32>
    %c0_20 = arith.constant 0 : index
    %c0_21 = arith.constant 0 : index
    %30 = vector.load %arg8[%c0_20, %c0_21] : memref<1x128xf32, #tpu.memory_space<vmem>>, vector<1x128xf32>
    tpu.vector_store %arg8[%c0_20, %c0_21], %29 {strides = array<i32>} : memref<1x128xf32, #tpu.memory_space<vmem>>, vector<1x128xf32>,
    return
  }
  func.func @transform_0(%arg0: i32) -> (i32, i32) {
    %c0_i32 = arith.constant 0 : i32
    %c0_i32_0 = arith.constant 0 : i32
    return %c0_i32, %arg0 : i32, i32
  }
  func.func @transform_1(%arg0: i32) -> (i32, i32) {
    %c0_i32 = arith.constant 0 : i32
    %c0_i32_0 = arith.constant 0 : i32
    %c0_i32_1 = arith.constant 0 : i32
    return %c0_i32, %c0_i32_0 : i32, i32
  }
  func.func @transform_2(%arg0: i32) -> (i32, i32) {
    %c0_i32 = arith.constant 0 : i32
    %c0_i32_0 = arith.constant 0 : i32
    %c0_i32_1 = arith.constant 0 : i32
    return %c0_i32, %c0_i32_0 : i32, i32
  }
  func.func @transform_3(%arg0: i32) -> (i32, i32) {
    %c0_i32 = arith.constant 0 : i32
    %c0_i32_0 = arith.constant 0 : i32
    %c0_i32_1 = arith.constant 0 : i32
    return %c0_i32, %c0_i32_0 : i32, i32
  }
  func.func @transform_4(%arg0: i32) -> (i32, i32) {
    %c0_i32 = arith.constant 0 : i32
    %c0_i32_0 = arith.constant 0 : i32
    %c0_i32_1 = arith.constant 0 : i32
    return %c0_i32, %c0_i32_0 : i32, i32
  }
  func.func @transform_5(%arg0: i32) -> (i32, i32) {
    %c0_i32 = arith.constant 0 : i32
    %c0_i32_0 = arith.constant 0 : i32
    %c0_i32_1 = arith.constant 0 : i32
    return %c0_i32, %c0_i32_0 : i32, i32
  }
  func.func @transform_6(%arg0: i32) -> (i32, i32) {
    %c0_i32 = arith.constant 0 : i32
    %c0_i32_0 = arith.constant 0 : i32
    %c0_i32_1 = arith.constant 0 : i32
    return %c0_i32, %c0_i32_0 : i32, i32
  }
  func.func @transform_7(%arg0: i32) -> (i32, i32) {
    %c0_i32 = arith.constant 0 : i32
    %c0_i32_0 = arith.constant 0 : i32
    return %c0_i32, %arg0 : i32, i32
  }
}

</mosaic_0001>

<llo_original>
// kernel: tpu_custom_call.1
$region0: #{tpu_custom_call.1}
  #allocation0 [shape = 'u32[]', space=smem, size = 0x4, offset = 0x4, fixed_abs, tag = 'smem constant byte address 0x4 - core index']
  #allocation1 [shape = 'u32[72,128]{1,0:T(1,128)}', space=vmem, size = 0x9000, scoped, tag = 'internal scratch']
  #allocation2 [shape = 'f32[1,1]{1,0:T(1,128)S(6)}', space=smem, size = 0x200, scoped, tag = 'scoped memory for tpu_custom_call.1']
  %s0 = inlined_call_operand.vmem [shape: f32[4,128], index: 0, kind: input, shape index: {}]
  %s1 = inlined_call_operand.vmem [shape: f32[40,4], index: 1, kind: input, shape index: {}]
  %s2 = inlined_call_operand.vmem [shape: f32[40,1], index: 2, kind: input, shape index: {}]
  %s3 = inlined_call_operand.vmem [shape: f32[40,40], index: 3, kind: input, shape index: {}]
  %s4 = inlined_call_operand.vmem [shape: f32[40,1], index: 4, kind: input, shape index: {}]
  %s5 = inlined_call_operand.vmem [shape: f32[40,1], index: 5, kind: input, shape index: {}]
  %s6 = inlined_call_operand.<no memory space> [shape: f32[1,1], index: 6, kind: input, shape index: {}]
  %s7 = inlined_call_operand.hbm [shape: f32[1,128], index: 7, kind: output, shape index: {}]
  %s8 = sld [smem:[#allocation0]]
  $region38: #{tpu_custom_call.1} parent=0
    _
  %s10 = ssub.s32 1, %s8
  %s11 = scalar_select 0, %s10, %s8
  %12 = sst [smem:[#allocation2]] %s6
  $region1: #{tpu_custom_call.1} parent=0
    #allocation3 [shape = 'u8[512]{0}', space=vmem, size = 0x400, scoped, tag = 'output window, operand 0, single buffered']
    #allocation4 [shape = 's32[1]{0}', space=sflag, size = 0x4, scoped, tag = 'scoped memory for tpu_custom_call.1']
    %13 = vsyncpa [#allocation4], 0
    // Predicated region
    $region2: #{tpu_custom_call.1} parent=1 // pred_check
      _
    $region3: #{tpu_custom_call.1} parent=1 // pred_check_branch
      %15 = sbr.rel (0) target = $region5
    $region4: #{tpu_custom_call.1} parent=1 // pred_region
      _
    $region5: #{tpu_custom_call.1} parent=1 // pred_fallthru
      _
    // Predicated region
    $region6: #{tpu_custom_call.1} parent=1 // pred_check
      _
    $region7: #{tpu_custom_call.1} parent=1 // pred_check_branch
      %17 = sbr.rel (0) target = $region9
    $region8: #{tpu_custom_call.1} parent=1 // pred_region
      _
    $region9: #{tpu_custom_call.1} parent=1 // pred_fallthru
      _
    // Predicated region
    $region10: #{tpu_custom_call.1} parent=1 // pred_check
      _
    $region11: #{tpu_custom_call.1} parent=1 // pred_check_branch
      %19 = sbr.rel (0) target = $region13
    $region12: #{tpu_custom_call.1} parent=1 // pred_region
      _
    $region13: #{tpu_custom_call.1} parent=1 // pred_fallthru
      _
    // Predicated region
    $region14: #{tpu_custom_call.1} parent=1 // pred_check
      _
    $region15: #{tpu_custom_call.1} parent=1 // pred_check_branch
      %21 = sbr.rel (0) target = $region17
    $region16: #{tpu_custom_call.1} parent=1 // pred_region
      _
    $region17: #{tpu_custom_call.1} parent=1 // pred_fallthru
      _
    // Predicated region
    $region18: #{tpu_custom_call.1} parent=1 // pred_check
      _
    $region19: #{tpu_custom_call.1} parent=1 // pred_check_branch
      %23 = sbr.rel (0) target = $region21
    $region20: #{tpu_custom_call.1} parent=1 // pred_region
      _
    $region21: #{tpu_custom_call.1} parent=1 // pred_fallthru
      _
    // Predicated region
    $region22: #{tpu_custom_call.1} parent=1 // pred_check
      _
    $region23: #{tpu_custom_call.1} parent=1 // pred_check_branch
      %25 = sbr.rel (0) target = $region25
    $region24: #{tpu_custom_call.1} parent=1 // pred_region
      _
    $region25: #{tpu_custom_call.1} parent=1 // pred_fallthru
      _
    // Predicated region
    $region26: #{tpu_custom_call.1} parent=1 // pred_check
      _
    $region27: #{tpu_custom_call.1} parent=1 // pred_check_branch
      %27 = sbr.rel (0) target = $region29
    $region28: #{tpu_custom_call.1} parent=1 // pred_region
      _
    $region29: #{tpu_custom_call.1} parent=1 // pred_fallthru
      _
    %v28 = vld [vmem:[%s0] sm:$0xf]
    %v29 = vld [vmem:[%s1] sm:$0xff]
    %v30 = vld [vmem:[%s1 + $0x8] sm:$0xff]
    %v31 = vld [vmem:[%s1 + $0x10] sm:$0xff]
    %v32 = vld [vmem:[%s1 + $0x18] sm:$0xff]
    %v33 = vld [vmem:[%s1 + $0x20] sm:$0xff]
    %v34 = vld [vmem:[%s2] sm:$0xff]
    %v35 = vld [vmem:[%s2 + $0x8] sm:$0xff]
    %v36 = vld [vmem:[%s2 + $0x10] sm:$0xff]
    %v37 = vld [vmem:[%s2 + $0x18] sm:$0xff]
    %v38 = vld [vmem:[%s2 + $0x20] sm:$0xff]
    %40 = vset.pattern.permute.xlu0 0
    %41 = vperm.xlu0 %40, %v34
    %v42 = vpop.permute.xlu0 %41
    %45 = vset.pattern.permute.xlu0 0
    %46 = vperm.xlu0 %45, %v35
    %v47 = vpop.permute.xlu0 %46
    %50 = vset.pattern.permute.xlu0 0
    %51 = vperm.xlu0 %50, %v36
    %v52 = vpop.permute.xlu0 %51
    %55 = vset.pattern.permute.xlu0 0
    %56 = vperm.xlu0 %55, %v37
    %v57 = vpop.permute.xlu0 %56
    %60 = vset.pattern.permute.xlu0 0
    %61 = vperm.xlu0 %60, %v38
    %v62 = vpop.permute.xlu0 %61
    %vm64 = vcmask 31744
    %v66 = vsel %vm64, %v29, 0
    %v69 = vsel %vm64, %v30, 0
    %v72 = vsel %vm64, %v31, 0
    %v75 = vsel %vm64, %v32, 0
    %v78 = vsel %vm64, %v33, 0
    %vm80 = vcmask 1043456
    %v82 = vsel %vm80, %v28, 0
    %84 = vmatpush.msra.mxu0 0.0
    %85 = vmatpush.msra.mxu0 0.0
    %86 = vmatpush.msra.mxu0 0.0
    %87 = vmatpush.msra.mxu0 0.0
    %88 = vmatpush.msra.mxu0 0.0
    %89 = vmatpush.msra.mxu0 0.0
    %90 = vmatpush.msra.mxu0 0.0
    %91 = vmatpush.msra.mxu0 0.0
    %92 = vmatpush.msra.mxu0 0.0
    %93 = vmatpush.msra.mxu0 0.0
    %94 = vmatpush.msra.mxu0 0.0
    %95 = vmatpush.msra.mxu0 0.0
    %96 = vmatpush.msra.mxu0 0.0
    %97 = vmatpush.msra.mxu0 0.0
    %98 = vmatpush.msra.mxu0 0.0
    %99 = vmatpush.msra.mxu0 %v82
    %100 = vmatmul.f32.gmra.mxu0 %v66
    %v101 = vpop.f32.mrf.mxu0
    %v102 = vadd.f32 %v42, %v101
    %103 = vmatmul.f32.gmra.mxu0 %v69
    %v104 = vpop.f32.mrf.mxu0
    %v105 = vadd.f32 %v47, %v104
    %106 = vmatmul.f32.gmra.mxu0 %v72
    %v107 = vpop.f32.mrf.mxu0
    %v108 = vadd.f32 %v52, %v107
    %109 = vmatmul.f32.gmra.mxu0 %v75
    %v110 = vpop.f32.mrf.mxu0
    %v111 = vadd.f32 %v57, %v110
    %112 = vmatmul.f32.gmra.mxu0 %v78
    %v113 = vpop.f32.mrf.mxu0
    %v114 = vadd.f32 %v62, %v113
    %115 = vdwg.mxu0
    %v116 = vmax.f32 %v102, 0.0
    %v117 = vmax.f32 %v105, 0.0
    %v118 = vmax.f32 %v108, 0.0
    %v119 = vmax.f32 %v111, 0.0
    %v120 = vmax.f32 %v114, 0.0
    %v121 = vld [vmem:[%s3] sm:$0xff]
    %v122 = vld [vmem:[%s3 + $0x8] sm:$0xff]
    %v123 = vld [vmem:[%s3 + $0x10] sm:$0xff]
    %v124 = vld [vmem:[%s3 + $0x18] sm:$0xff]
    %v125 = vld [vmem:[%s3 + $0x20] sm:$0xff]
    %v126 = vld [vmem:[%s4] sm:$0xff]
    %v127 = vld [vmem:[%s4 + $0x8] sm:$0xff]
    %v128 = vld [vmem:[%s4 + $0x10] sm:$0xff]
    %v129 = vld [vmem:[%s4 + $0x18] sm:$0xff]
    %v130 = vld [vmem:[%s4 + $0x20] sm:$0xff]
    %132 = vset.pattern.permute.xlu0 0
    %133 = vperm.xlu0 %132, %v126
    %v134 = vpop.permute.xlu0 %133
    %137 = vset.pattern.permute.xlu0 0
    %138 = vperm.xlu0 %137, %v127
    %v139 = vpop.permute.xlu0 %138
    %142 = vset.pattern.permute.xlu0 0
    %143 = vperm.xlu0 %142, %v128
    %v144 = vpop.permute.xlu0 %143
    %147 = vset.pattern.permute.xlu0 0
    %148 = vperm.xlu0 %147, %v129
    %v149 = vpop.permute.xlu0 %148
    %152 = vset.pattern.permute.xlu0 0
    %153 = vperm.xlu0 %152, %v130
    %v154 = vpop.permute.xlu0 %153
    %vm156 = vcmask 326656
    %v158 = vsel %vm156, %v121, 0
    %v161 = vsel %vm156, %v122, 0
    %v164 = vsel %vm156, %v123, 0
    %v167 = vsel %vm156, %v124, 0
    %v170 = vsel %vm156, %v125, 0
    %172 = vmatpush.msra.mxu0 0.0
    %173 = vmatpush.msra.mxu0 0.0
    %174 = vmatpush.msra.mxu0 0.0
    %175 = vmatpush.msra.mxu0 0.0
    %176 = vmatpush.msra.mxu0 0.0
    %177 = vmatpush.msra.mxu0 0.0
    %178 = vmatpush.msra.mxu0 0.0
    %179 = vmatpush.msra.mxu0 0.0
    %180 = vmatpush.msra.mxu0 0.0
    %181 = vmatpush.msra.mxu0 0.0
    %182 = vmatpush.msra.mxu0 0.0
    %183 = vmatpush.msra.mxu0 %v120
    %184 = vmatpush.msra.mxu0 %v119
    %185 = vmatpush.msra.mxu0 %v118
    %186 = vmatpush.msra.mxu0 %v117
    %187 = vmatpush.msra.mxu0 %v116
    %188 = vmatmul.f32.gmra.mxu0 %v158
    %v189 = vpop.f32.mrf.mxu0
    %v190 = vadd.f32 %v134, %v189
    %191 = vmatmul.f32.gmra.mxu0 %v161
    %v192 = vpop.f32.mrf.mxu0
    %v193 = vadd.f32 %v139, %v192
    %194 = vmatmul.f32.gmra.mxu0 %v164
    %v195 = vpop.f32.mrf.mxu0
    %v196 = vadd.f32 %v144, %v195
    %197 = vmatmul.f32.gmra.mxu0 %v167
    %v198 = vpop.f32.mrf.mxu0
    %v199 = vadd.f32 %v149, %v198
    %200 = vmatmul.f32.gmra.mxu0 %v170
    %v201 = vpop.f32.mrf.mxu0
    %v202 = vadd.f32 %v154, %v201
    %203 = vdwg.mxu0
    %v204 = vmax.f32 %v190, 0.0
    %v205 = vmax.f32 %v193, 0.0
    %v206 = vmax.f32 %v196, 0.0
    %v207 = vmax.f32 %v199, 0.0
    %v208 = vmax.f32 %v202, 0.0
    %v209 = vld [vmem:[%s5] sm:$0xff]
    %v210 = vld [vmem:[%s5 + $0x8] sm:$0xff]
    %v211 = vld [vmem:[%s5 + $0x10] sm:$0xff]
    %v212 = vld [vmem:[%s5 + $0x18] sm:$0xff]
    %v213 = vld [vmem:[%s5 + $0x20] sm:$0xff]
    %215 = vset.pattern.permute.xlu0 0
    %216 = vperm.xlu0 %215, %v209
    %v217 = vpop.permute.xlu0 %216
    %220 = vset.pattern.permute.xlu0 0
    %221 = vperm.xlu0 %220, %v210
    %v222 = vpop.permute.xlu0 %221
    %225 = vset.pattern.permute.xlu0 0
    %226 = vperm.xlu0 %225, %v211
    %v227 = vpop.permute.xlu0 %226
    %230 = vset.pattern.permute.xlu0 0
    %231 = vperm.xlu0 %230, %v212
    %v232 = vpop.permute.xlu0 %231
    %235 = vset.pattern.permute.xlu0 0
    %236 = vperm.xlu0 %235, %v213
    %v237 = vpop.permute.xlu0 %236
    %v239 = vmul.f32 %v204, %v217
    %v240 = vmul.f32 %v205, %v222
    %v241 = vmul.f32 %v206, %v227
    %v242 = vmul.f32 %v207, %v232
    %v243 = vmul.f32 %v208, %v237
    %v244 = vadd.f32 %v239, %v240
    %v245 = vadd.f32 %v244, %v241
    %v246 = vadd.f32 %v245, %v242
    %v247 = vadd.f32 %v246, %v243
    %v248 = vrot.slane %v247, 4
    %v249 = vadd.f32 %v247, %v248
    %v250 = vrot.slane %v249, 2
    %v251 = vadd.f32 %v249, %v250
    %v252 = vrot.slane %v251, 1
    %v253 = vadd.f32 %v251, %v252
    %s254 = sld [smem:[#allocation2]]
    %v255 = vstv %s254
    %v256 = vadd.f32 %v253, %v255
    %v257 = vmul.f32 %v256, 0.5
    %v258 = vtanh.pop %v257
    %v259 = vmul.f32 %v258, 0.5
    %v260 = vadd.f32 %v259, 0.5
    %261 = vst [vmem:[#allocation3] sm:$0x1] %v260
    // Predicated region
    $region30: #{tpu_custom_call.1} parent=1 // pred_check
      _
    $region31: #{tpu_custom_call.1} parent=1 // pred_check_branch
      %263 = sbr.rel (0) target = $region33
    $region32: #{tpu_custom_call.1} parent=1 // pred_region
      %265 = vsyncadd [#allocation4], 0
      %s267 = sshll.u32 [#allocation3], 4
      %s268 = int_to_ptr.vmem [resolvable:$true] %s267
      %s269 = sshll.u32 %s7, 4
      %s270 = int_to_ptr.hbm [resolvable:$true] %s269
      %272 = dma.vmem_to_hbm [thread:$0]  %s268, 16, %s270, [#allocation4]
    $region33: #{tpu_custom_call.1} parent=1 // pred_fallthru
      _
    // Predicated region
    $region34: #{tpu_custom_call.1} parent=1 // pred_check
      _
    $region35: #{tpu_custom_call.1} parent=1 // pred_check_branch
      %274 = sbr.rel (0) target = $region37
    $region36: #{tpu_custom_call.1} parent=1 // pred_region
      %276 = dma.done [#allocation4], 16
    $region37: #{tpu_custom_call.1} parent=1 // pred_fallthru
      _
    %277 = vsyncpa [#allocation4], 1

</llo_original>
